<compile_context>
chip_gen: v6e
topology: v6e:2x2x1
jax: 0.10.0
libtpu: 0.0.40
codegen_flags: <defaults>
</compile_context>

<pallas_src>
import jax
import jax.numpy as jnp
import numpy as np
from jax.experimental import pallas as pl
from jax.experimental.pallas import tpu as pltpu

BN_EPS = 1e-5


# -----------------------------------------------------------------------------
# Kernel: three matmuls + two relus per batch tile. All weights are small and
# resident; activations are lane-dense (256 / 32 / 32 / 128 lanes).
# -----------------------------------------------------------------------------
def fet_kernel(mstr_ref, inv_lens_ref, ctx_ref,
               w1c_ref, w1m_ref, b1_ref,
               w2_ref, b2_ref,
               wout_ref, bout_ref,
               out_ref):
    # mention pooling as a matmul: (TB, L*Dw) @ (L*Dw, H) == sum_l mstr[:,l,:] @ w1m
    pooled = jnp.dot(mstr_ref[...], w1m_ref[...],
                     preferred_element_type=jnp.float32)            # (TB, H)

    # layer 1 (+ relu); 1/len applied post-matmul as a (TB, H)-wide VPU mul
    h1 = (jnp.dot(ctx_ref[...], w1c_ref[...],
                  preferred_element_type=jnp.float32)
          + pooled * inv_lens_ref[...]
          + b1_ref[...])                                            # (TB, H)
    h1 = jnp.maximum(h1, 0.0)

    # layer 2 (+ relu); BN1 already folded into w2/b2
    h2 = jnp.maximum(
        jnp.dot(h1, w2_ref[...], preferred_element_type=jnp.float32)
        + b2_ref[...], 0.0)                                         # (TB, H)

    # layer 3 + type-embedding matmul folded into one lane-dense (H, N) matmul
    out_ref[...] = (jnp.dot(h2, wout_ref[...],
                            preferred_element_type=jnp.float32)
                    + bout_ref[...])                                # (TB, N)


def _round_up(x, m):
    return (x + m - 1) // m * m


def _fold_params(params, L):
    """Eval-mode BN folding + (W3 @ type_emb) folding + pooled-matmul weight tiling.

    bn rows = [gamma, beta, running_mean, running_var].
    """
    bn1, bn2 = params["bn1"], params["bn2"]
    s1 = bn1[0] / jnp.sqrt(bn1[3] + BN_EPS)          # (H,)
    t1 = bn1[1] - bn1[2] * s1                        # (H,)
    s2 = bn2[0] / jnp.sqrt(bn2[3] + BN_EPS)
    t2 = bn2[1] - bn2[2] * s2

    w2f = s1[:, None] * params["w2"]                 # (H, H)
    b2f = (t1 @ params["w2"])[None, :] + params["b2"]    # (1, H)

    w3f = s2[:, None] * params["w3"]                 # (H, Te)
    b3f = (t2 @ params["w3"])[None, :] + params["b3"]    # (1, Te)

    w_out = w3f @ params["temb"]                     # (H, N)  lane-dense output weight
    b_out = b3f @ params["temb"]                     # (1, N)

    w1m_tiled = jnp.tile(params["w1m"], (L, 1))      # (L*Dw, H), matches row-major flatten

    return dict(w1c=params["w1c"], w1m=w1m_tiled, b1=params["b1"],
                w2=w2f, b2=b2f, wout=w_out, bout=b_out)


def _choose_batch_tile(B):
    """Batch tile: sublane-aligned (multiple of 8), large enough to amortize the
    ~0.35 us/step grid overhead, but never so large that the grid collapses to a
    single step when B >= 16 (keeps both v7x TensorCores busy under 'parallel')."""
    TB_MAX = 2048
    tb = max(8, _round_up(pl.cdiv(B, 2), 8))
    return min(TB_MAX, tb)


def fet_forward(mstr, lens, ctx, params):
    """mstr: (B, L, Dw) with zeroed padding, lens: (B, 1) float >= 1, ctx: (B, Dc)."""
    B, L, Dw = mstr.shape
    Dc = ctx.shape[1]
    H = params["w1c"].shape[1]
    N = params["temb"].shape[1]
    K = L * Dw

    folded = _fold_params(params, L)

    # Flatten mention seqs (metadata-only reshape) and precompute 1/len on host.
    mstr_flat = mstr.reshape(B, K)
    inv_lens = 1.0 / lens                            # caller guarantees len >= 1

    TB = _choose_batch_tile(B)
    # No host-side padding of the streams: the edge block (if B % TB != 0) is partial.
    # Out-of-range rows read unspecified data, but rows never mix and their writeback
    # is masked, so the (B, N) output is exact.
    grid = (pl.cdiv(B, TB),)

    batch_spec = lambda cols: pl.BlockSpec((TB, cols), lambda i: (i, 0))
    const_spec = lambda shp: pl.BlockSpec(shp, lambda i: (0,) * len(shp))

    bpe = jnp.dtype(mstr_flat.dtype).itemsize        # stream bytes/elem (f32 or bf16)
    # VMEM budget: double-buffered batch streams + (default double-buffered) weights.
    stream_bytes = 2 * TB * ((K + Dc) * bpe + (N + 1) * 4)
    weight_bytes = 2 * 4 * (Dc * H + K * H + H + H * H + H + H * N + N)
    vmem_limit = min(int(stream_bytes + weight_bytes) + (8 << 20), 96 << 20)

    flops = 2 * B * (K * H + Dc * H + H * H + H * N)
    bytes_accessed = B * ((K + Dc) * bpe + (N + 1) * 4) + weight_bytes // 2

    out = pl.pallas_call(
        fet_kernel,
        out_shape=jax.ShapeDtypeStruct((B, N), jnp.float32),
        grid_spec=pltpu.PrefetchScalarGridSpec(
            num_scalar_prefetch=0,
            grid=grid,
            in_specs=[
                batch_spec(K),          # mstr_flat (B, L*Dw)   -- dominant HBM stream
                batch_spec(1),          # inv_lens  (B, 1)
                batch_spec(Dc),         # ctx       (B, Dc)
                const_spec((Dc, H)),    # W1 context part
                const_spec((K, H)),     # W1 mention part, tiled (L*Dw, H)
                const_spec((1, H)),     # b1
                const_spec((H, H)),     # W2 (BN1 folded)
                const_spec((1, H)),     # b2 (BN1 folded)
                const_spec((H, N)),     # W_out = (BN2-folded W3) @ type_emb
                const_spec((1, N)),     # b_out
            ],
            out_specs=batch_spec(N),
        ),
        compiler_params=pltpu.CompilerParams(
            dimension_semantics=("parallel",),       # batch tiles independent (2 TCs on v7x)
            vmem_limit_bytes=vmem_limit),
        cost_estimate=pl.CostEstimate(
            flops=flops, transcendentals=0, bytes_accessed=bytes_accessed),
    )(mstr_flat, inv_lens, ctx,
      folded["w1c"], folded["w1m"], folded["b1"],
      folded["w2"], folded["b2"],
      folded["wout"], folded["bout"])

    return out


def fet_reference(mstr, lens, ctx, params):
    """Pure-JAX reference with the ORIGINAL (unfolded) parameterization."""
    avg = jnp.sum(mstr, axis=1) / lens
    h1 = ctx @ params["w1c"] + avg @ params["w1m"] + params["b1"]
    h1 = jnp.maximum(h1, 0.0)
    bn1 = params["bn1"]
    h1 = (h1 - bn1[2:3]) / jnp.sqrt(bn1[3:4] + BN_EPS) * bn1[0:1] + bn1[1:2]
    h2 = jnp.maximum(h1 @ params["w2"] + params["b2"], 0.0)
    bn2 = params["bn2"]
    h2 = (h2 - bn2[2:3]) / jnp.sqrt(bn2[3:4] + BN_EPS) * bn2[0:1] + bn2[1:2]
    reps = h2 @ params["w3"] + params["b3"]
    return reps @ params["temb"]


if __name__ == "__main__":
    # small shapes consistent with the module
    B = 8            # batch
    L = 8            # padded mention-string length
    Dw = 32          # word_vec_dim
    Dc = 32          # context hidden dim (lstm_hidden_dim * 2, concat_lstm=False)
    H = 32           # mlp_hidden_dim
    Te = 32          # type_embed_dim
    N = 128          # n_types

    key = jax.random.PRNGKey(0)
    ks = jax.random.split(key, 16)

    # inputs (padding positions zeroed -- contract required by the pooling)
    mstr = jax.random.normal(ks[0], (B, L, Dw), jnp.float32)
    lens_i = jax.random.randint(ks[1], (B,), 1, L + 1)
    mask = (jnp.arange(L)[None, :] < lens_i[:, None]).astype(jnp.float32)
    mstr = mstr * mask[:, :, None]
    lens = lens_i.astype(jnp.float32).reshape(B, 1)
    ctx = jax.random.normal(ks[2], (B, Dc), jnp.float32)

    # parameters (deterministic synthetic init; W stored transposed as (in, out))
    params = {
        "w1c": 0.1 * jax.random.normal(ks[3], (Dc, H), jnp.float32),
        "w1m": 0.1 * jax.random.normal(ks[4], (Dw, H), jnp.float32),
        "b1":  0.1 * jax.random.normal(ks[5], (1, H), jnp.float32),
        "bn1": jnp.stack([
            1.0 + 0.05 * jax.random.normal(ks[6], (H,)),     # gamma
            0.05 * jax.random.normal(ks[7], (H,)),           # beta
            jnp.zeros((H,), jnp.float32),                    # running_mean
            jnp.ones((H,), jnp.float32),                     # running_var
        ]).astype(jnp.float32),
        "w2":  0.1 * jax.random.normal(ks[8], (H, H), jnp.float32),
        "b2":  0.1 * jax.random.normal(ks[9], (1, H), jnp.float32),
        "bn2": jnp.stack([
            1.0 + 0.05 * jax.random.normal(ks[10], (H,)),
            0.05 * jax.random.normal(ks[11], (H,)),
            jnp.zeros((H,), jnp.float32),
            jnp.ones((H,), jnp.float32),
        ]).astype(jnp.float32),
        "w3":  0.1 * jax.random.normal(ks[12], (H, Te), jnp.float32),
        "b3":  0.1 * jax.random.normal(ks[13], (1, Te), jnp.float32),
        # type_embeddings ~ N(0, 0.01), shape (type_embed_dim, n_types)
        "temb": 0.01 * jax.random.normal(ks[14], (Te, N), jnp.float32),
    }

    logits = fet_forward(mstr, lens, ctx, params)
    logits = jax.block_until_ready(logits)
    assert logits.shape == (B, N)

    ref = fet_reference(mstr, lens, ctx, params)
    np.testing.assert_allclose(np.asarray(logits), np.asarray(ref),
                               rtol=1e-4, atol=1e-4)
    print("KERNEL_OK")
</pallas_src>

<mosaic_0001>
module attributes {stable_mosaic.version = 11 : i64} {
  func.func @fet_kernel(%arg0: i32, %arg1: memref<8x256xf32, #tpu.memory_space<vmem>>, %arg2: memref<8x1xf32, #tpu.memory_space<vmem>>, %arg3: memref<8x32xf32, #tpu.memory_space<vmem>>, %arg4: memref<32x32xf32, #tpu.memory_space<vmem>>, %arg5: memref<256x32xf32, #tpu.memory_space<vmem>>, %arg6: memref<1x32xf32, #tpu.memory_space<vmem>>, %arg7: memref<32x32xf32, #tpu.memory_space<vmem>>, %arg8: memref<1x32xf32, #tpu.memory_space<vmem>>, %arg9: memref<32x128xf32, #tpu.memory_space<vmem>>, %arg10: memref<1x128xf32, #tpu.memory_space<vmem>>, %arg11: memref<8x128xf32, #tpu.memory_space<vmem>>) attributes {dimension_semantics = [#tpu.dimension_semantics<parallel>], iteration_bounds = array<i64: 1>, scalar_prefetch = 0 : i64, scratch_operands = 0 : i64, tpu.core_type = #tpu.core_type<tc>, window_params = [{transform_indices = @transform_0, window_bounds = array<i64: 8, 256>}, {transform_indices = @transform_1, window_bounds = array<i64: 8, 1>}, {transform_indices = @transform_2, window_bounds = array<i64: 8, 32>}, {pipeline_mode = #tpu.pipeline_mode<synchronous>, transform_indices = @transform_3, window_bounds = array<i64: 32, 32>}, {pipeline_mode = #tpu.pipeline_mode<synchronous>, transform_indices = @transform_4, window_bounds = array<i64: 256, 32>}, {pipeline_mode = #tpu.pipeline_mode<synchronous>, transform_indices = @transform_5, window_bounds = array<i64: 1, 32>}, {pipeline_mode = #tpu.pipeline_mode<synchronous>, transform_indices = @transform_6, window_bounds = array<i64: 32, 32>}, {pipeline_mode = #tpu.pipeline_mode<synchronous>, transform_indices = @transform_7, window_bounds = array<i64: 1, 32>}, {pipeline_mode = #tpu.pipeline_mode<synchronous>, transform_indices = @transform_8, window_bounds = array<i64: 32, 128>}, {pipeline_mode = #tpu.pipeline_mode<synchronous>, transform_indices = @transform_9, window_bounds = array<i64: 1, 128>}, {transform_indices = @transform_10, window_bounds = array<i64: 8, 128>}]} {
    %c0 = arith.constant 0 : index
    %c0_0 = arith.constant 0 : index
    %0 = vector.load %arg1[%c0, %c0_0] : memref<8x256xf32, #tpu.memory_space<vmem>>, vector<8x256xf32>
    %c0_1 = arith.constant 0 : index
    %c0_2 = arith.constant 0 : index
    %1 = vector.load %arg5[%c0_1, %c0_2] : memref<256x32xf32, #tpu.memory_space<vmem>>, vector<256x32xf32>
    %cst = arith.constant dense<0.000000e+00> : vector<8x32xf32>
    %2 = tpu.matmul %0, %1, %cst {dimension_numbers = #tpu.dot_dimension_numbers<[1], [0], [0], [1], [0, 0, 1, 1], [], []>} : vector<8x256xf32>, vector<256x32xf32>, vector<8x32xf32> -> vector<8x32xf32>
    %c0_3 = arith.constant 0 : index
    %c0_4 = arith.constant 0 : index
    %3 = vector.load %arg3[%c0_3, %c0_4] : memref<8x32xf32, #tpu.memory_space<vmem>>, vector<8x32xf32>
    %c0_5 = arith.constant 0 : index
    %c0_6 = arith.constant 0 : index
    %4 = vector.load %arg4[%c0_5, %c0_6] : memref<32x32xf32, #tpu.memory_space<vmem>>, vector<32x32xf32>
    %cst_7 = arith.constant dense<0.000000e+00> : vector<8x32xf32>
    %5 = tpu.matmul %3, %4, %cst_7 {dimension_numbers = #tpu.dot_dimension_numbers<[1], [0], [0], [1], [0, 0, 1, 1], [], []>} : vector<8x32xf32>, vector<32x32xf32>, vector<8x32xf32> -> vector<8x32xf32>
    %c0_8 = arith.constant 0 : index
    %c0_9 = arith.constant 0 : index
    %6 = vector.load %arg2[%c0_8, %c0_9] : memref<8x1xf32, #tpu.memory_space<vmem>>, vector<8x1xf32>
    %7 = vector.broadcast %6 : vector<8x1xf32> to vector<8x32xf32>
    %8 = arith.mulf %2, %7 : vector<8x32xf32>
    %9 = arith.addf %5, %8 : vector<8x32xf32>
    %c0_10 = arith.constant 0 : index
    %c0_11 = arith.constant 0 : index
    %10 = vector.load %arg6[%c0_10, %c0_11] : memref<1x32xf32, #tpu.memory_space<vmem>>, vector<1x32xf32>
    %11 = vector.broadcast %10 : vector<1x32xf32> to vector<8x32xf32>
    %12 = arith.addf %9, %11 : vector<8x32xf32>
    %cst_12 = arith.constant 0.000000e+00 : f32
    %13 = vector.broadcast %cst_12 : f32 to vector<8x32xf32>
    %14 = arith.maximumf %12, %13 : vector<8x32xf32>
    %c0_13 = arith.constant 0 : index
    %c0_14 = arith.constant 0 : index
    %15 = vector.load %arg7[%c0_13, %c0_14] : memref<32x32xf32, #tpu.memory_space<vmem>>, vector<32x32xf32>
    %cst_15 = arith.constant dense<0.000000e+00> : vector<8x32xf32>
    %16 = tpu.matmul %14, %15, %cst_15 {dimension_numbers = #tpu.dot_dimension_numbers<[1], [0], [0], [1], [0, 0, 1, 1], [], []>} : vector<8x32xf32>, vector<32x32xf32>, vector<8x32xf32> -> vector<8x32xf32>
    %c0_16 = arith.constant 0 : index
    %c0_17 = arith.constant 0 : index
    %17 = vector.load %arg8[%c0_16, %c0_17] : memref<1x32xf32, #tpu.memory_space<vmem>>, vector<1x32xf32>
    %18 = vector.broadcast %17 : vector<1x32xf32> to vector<8x32xf32>
    %19 = arith.addf %16, %18 : vector<8x32xf32>
    %cst_18 = arith.constant 0.000000e+00 : f32
    %20 = vector.broadcast %cst_18 : f32 to vector<8x32xf32>
    %21 = arith.maximumf %19, %20 : vector<8x32xf32>
    %c0_19 = arith.constant 0 : index
    %c0_20 = arith.constant 0 : index
    %22 = vector.load %arg9[%c0_19, %c0_20] : memref<32x128xf32, #tpu.memory_space<vmem>>, vector<32x128xf32>
    %cst_21 = arith.constant dense<0.000000e+00> : vector<8x128xf32>
    %23 = tpu.matmul %21, %22, %cst_21 {dimension_numbers = #tpu.dot_dimension_numbers<[1], [0], [0], [1], [0, 0, 1, 1], [], []>} : vector<8x32xf32>, vector<32x128xf32>, vector<8x128xf32> -> vector<8x128xf32>
    %c0_22 = arith.constant 0 : index
    %c0_23 = arith.constant 0 : index
    %24 = vector.load %arg10[%c0_22, %c0_23] : memref<1x128xf32, #tpu.memory_space<vmem>>, vector<1x128xf32>
    %25 = vector.broadcast %24 : vector<1x128xf32> to vector<8x128xf32>
    %26 = arith.addf %23, %25 : vector<8x128xf32>
    %c0_24 = arith.constant 0 : index
    %c0_25 = arith.constant 0 : index
    %27 = vector.load %arg11[%c0_24, %c0_25] : memref<8x128xf32, #tpu.memory_space<vmem>>, vector<8x128xf32>
    tpu.vector_store %arg11[%c0_24, %c0_25], %26 {strides = array<i32>} : memref<8x128xf32, #tpu.memory_space<vmem>>, vector<8x128xf32>,
    return
  }
  func.func @transform_0(%arg0: i32) -> (i32, i32) {
    %c0_i32 = arith.constant 0 : i32
    %c0_i32_0 = arith.constant 0 : i32
    return %arg0, %c0_i32 : i32, i32
  }
  func.func @transform_1(%arg0: i32) -> (i32, i32) {
    %c0_i32 = arith.constant 0 : i32
    %c0_i32_0 = arith.constant 0 : i32
    return %arg0, %c0_i32 : i32, i32
  }
  func.func @transform_2(%arg0: i32) -> (i32, i32) {
    %c0_i32 = arith.constant 0 : i32
    %c0_i32_0 = arith.constant 0 : i32
    return %arg0, %c0_i32 : i32, i32
  }
  func.func @transform_3(%arg0: i32) -> (i32, i32) {
    %c0_i32 = arith.constant 0 : i32
    %c0_i32_0 = arith.constant 0 : i32
    %c0_i32_1 = arith.constant 0 : i32
    return %c0_i32, %c0_i32_0 : i32, i32
  }
  func.func @transform_4(%arg0: i32) -> (i32, i32) {
    %c0_i32 = arith.constant 0 : i32
    %c0_i32_0 = arith.constant 0 : i32
    %c0_i32_1 = arith.constant 0 : i32
    return %c0_i32, %c0_i32_0 : i32, i32
  }
  func.func @transform_5(%arg0: i32) -> (i32, i32) {
    %c0_i32 = arith.constant 0 : i32
    %c0_i32_0 = arith.constant 0 : i32
    %c0_i32_1 = arith.constant 0 : i32
    return %c0_i32, %c0_i32_0 : i32, i32
  }
  func.func @transform_6(%arg0: i32) -> (i32, i32) {
    %c0_i32 = arith.constant 0 : i32
    %c0_i32_0 = arith.constant 0 : i32
    %c0_i32_1 = arith.constant 0 : i32
    return %c0_i32, %c0_i32_0 : i32, i32
  }
  func.func @transform_7(%arg0: i32) -> (i32, i32) {
    %c0_i32 = arith.constant 0 : i32
    %c0_i32_0 = arith.constant 0 : i32
    %c0_i32_1 = arith.constant 0 : i32
    return %c0_i32, %c0_i32_0 : i32, i32
  }
  func.func @transform_8(%arg0: i32) -> (i32, i32) {
    %c0_i32 = arith.constant 0 : i32
    %c0_i32_0 = arith.constant 0 : i32
    %c0_i32_1 = arith.constant 0 : i32
    return %c0_i32, %c0_i32_0 : i32, i32
  }
  func.func @transform_9(%arg0: i32) -> (i32, i32) {
    %c0_i32 = arith.constant 0 : i32
    %c0_i32_0 = arith.constant 0 : i32
    %c0_i32_1 = arith.constant 0 : i32
    return %c0_i32, %c0_i32_0 : i32, i32
  }
  func.func @transform_10(%arg0: i32) -> (i32, i32) {
    %c0_i32 = arith.constant 0 : i32
    %c0_i32_0 = arith.constant 0 : i32
    return %arg0, %c0_i32 : i32, i32
  }
}

</mosaic_0001>

<llo_original>
// kernel: tpu_custom_call.1
$region0: #{tpu_custom_call.1}
  #allocation0 [shape = 'u32[]', space=smem, size = 0x4, offset = 0x4, fixed_abs, tag = 'smem constant byte address 0x4 - core index']
  #allocation1 [shape = 'u32[144,128]{1,0:T(1,128)}', space=vmem, size = 0x12000, scoped, tag = 'internal scratch']
  %s0 = inlined_call_operand.vmem [shape: f32[8,256], index: 0, kind: input, shape index: {}]
  %s1 = inlined_call_operand.vmem [shape: f32[8,1], index: 1, kind: input, shape index: {}]
  %s2 = inlined_call_operand.vmem [shape: f32[8,32], index: 2, kind: input, shape index: {}]
  %s3 = inlined_call_operand.vmem [shape: f32[32,32], index: 3, kind: input, shape index: {}]
  %s4 = inlined_call_operand.vmem [shape: f32[256,32], index: 4, kind: input, shape index: {}]
  %s5 = inlined_call_operand.vmem [shape: f32[1,32], index: 5, kind: input, shape index: {}]
  %s6 = inlined_call_operand.vmem [shape: f32[32,32], index: 6, kind: input, shape index: {}]
  %s7 = inlined_call_operand.vmem [shape: f32[1,32], index: 7, kind: input, shape index: {}]
  %s8 = inlined_call_operand.vmem [shape: f32[32,128], index: 8, kind: input, shape index: {}]
  %s9 = inlined_call_operand.vmem [shape: f32[1,128], index: 9, kind: input, shape index: {}]
  %s10 = inlined_call_operand.hbm [shape: f32[8,128], index: 10, kind: output, shape index: {}]
  %s11 = sld [smem:[#allocation0]]
  $region50: #{tpu_custom_call.1} parent=0
    _
  %s13 = ssub.s32 1, %s11
  %s14 = scalar_select 0, %s13, %s11
  $region1: #{tpu_custom_call.1} parent=0
    #allocation2 [shape = 'u8[4096]{0}', space=vmem, size = 0x1000, scoped, tag = 'output window, operand 0, single buffered']
    #allocation3 [shape = 's32[1]{0}', space=sflag, size = 0x4, scoped, tag = 'scoped memory for tpu_custom_call.1']
    %15 = vsyncpa [#allocation3], 0
    // Predicated region
    $region2: #{tpu_custom_call.1} parent=1 // pred_check
      _
    $region3: #{tpu_custom_call.1} parent=1 // pred_check_branch
      %17 = sbr.rel (0) target = $region5
    $region4: #{tpu_custom_call.1} parent=1 // pred_region
      _
    $region5: #{tpu_custom_call.1} parent=1 // pred_fallthru
      _
    // Predicated region
    $region6: #{tpu_custom_call.1} parent=1 // pred_check
      _
    $region7: #{tpu_custom_call.1} parent=1 // pred_check_branch
      %19 = sbr.rel (0) target = $region9
    $region8: #{tpu_custom_call.1} parent=1 // pred_region
      _
    $region9: #{tpu_custom_call.1} parent=1 // pred_fallthru
      _
    // Predicated region
    $region10: #{tpu_custom_call.1} parent=1 // pred_check
      _
    $region11: #{tpu_custom_call.1} parent=1 // pred_check_branch
      %21 = sbr.rel (0) target = $region13
    $region12: #{tpu_custom_call.1} parent=1 // pred_region
      _
    $region13: #{tpu_custom_call.1} parent=1 // pred_fallthru
      _
    // Predicated region
    $region14: #{tpu_custom_call.1} parent=1 // pred_check
      _
    $region15: #{tpu_custom_call.1} parent=1 // pred_check_branch
      %23 = sbr.rel (0) target = $region17
    $region16: #{tpu_custom_call.1} parent=1 // pred_region
      _
    $region17: #{tpu_custom_call.1} parent=1 // pred_fallthru
      _
    // Predicated region
    $region18: #{tpu_custom_call.1} parent=1 // pred_check
      _
    $region19: #{tpu_custom_call.1} parent=1 // pred_check_branch
      %25 = sbr.rel (0) target = $region21
    $region20: #{tpu_custom_call.1} parent=1 // pred_region
      _
    $region21: #{tpu_custom_call.1} parent=1 // pred_fallthru
      _
    // Predicated region
    $region22: #{tpu_custom_call.1} parent=1 // pred_check
      _
    $region23: #{tpu_custom_call.1} parent=1 // pred_check_branch
      %27 = sbr.rel (0) target = $region25
    $region24: #{tpu_custom_call.1} parent=1 // pred_region
      _
    $region25: #{tpu_custom_call.1} parent=1 // pred_fallthru
      _
    // Predicated region
    $region26: #{tpu_custom_call.1} parent=1 // pred_check
      _
    $region27: #{tpu_custom_call.1} parent=1 // pred_check_branch
      %29 = sbr.rel (0) target = $region29
    $region28: #{tpu_custom_call.1} parent=1 // pred_region
      _
    $region29: #{tpu_custom_call.1} parent=1 // pred_fallthru
      _
    // Predicated region
    $region30: #{tpu_custom_call.1} parent=1 // pred_check
      _
    $region31: #{tpu_custom_call.1} parent=1 // pred_check_branch
      %31 = sbr.rel (0) target = $region33
    $region32: #{tpu_custom_call.1} parent=1 // pred_region
      _
    $region33: #{tpu_custom_call.1} parent=1 // pred_fallthru
      _
    // Predicated region
    $region34: #{tpu_custom_call.1} parent=1 // pred_check
      _
    $region35: #{tpu_custom_call.1} parent=1 // pred_check_branch
      %33 = sbr.rel (0) target = $region37
    $region36: #{tpu_custom_call.1} parent=1 // pred_region
      _
    $region37: #{tpu_custom_call.1} parent=1 // pred_fallthru
      _
    // Predicated region
    $region38: #{tpu_custom_call.1} parent=1 // pred_check
      _
    $region39: #{tpu_custom_call.1} parent=1 // pred_check_branch
      %35 = sbr.rel (0) target = $region41
    $region40: #{tpu_custom_call.1} parent=1 // pred_region
      _
    $region41: #{tpu_custom_call.1} parent=1 // pred_fallthru
      _
    %v36 = vld [vmem:[%s0] sm:$0xff]
    %v37 = vld [vmem:[%s0 + $0x8] sm:$0xff]
    %v38 = vld [vmem:[%s4] sm:$0xff]
    %v39 = vld [vmem:[%s4 + $0x8] sm:$0xff]
    %v40 = vld [vmem:[%s4 + $0x10] sm:$0xff]
    %v41 = vld [vmem:[%s4 + $0x18] sm:$0xff]
    %v42 = vld [vmem:[%s4 + $0x20] sm:$0xff]
    %v43 = vld [vmem:[%s4 + $0x28] sm:$0xff]
    %v44 = vld [vmem:[%s4 + $0x30] sm:$0xff]
    %v45 = vld [vmem:[%s4 + $0x38] sm:$0xff]
    %v46 = vld [vmem:[%s4 + $0x40] sm:$0xff]
    %v47 = vld [vmem:[%s4 + $0x48] sm:$0xff]
    %v48 = vld [vmem:[%s4 + $0x50] sm:$0xff]
    %v49 = vld [vmem:[%s4 + $0x58] sm:$0xff]
    %v50 = vld [vmem:[%s4 + $0x60] sm:$0xff]
    %v51 = vld [vmem:[%s4 + $0x68] sm:$0xff]
    %v52 = vld [vmem:[%s4 + $0x70] sm:$0xff]
    %v53 = vld [vmem:[%s4 + $0x78] sm:$0xff]
    %v54 = vld [vmem:[%s4 + $0x80] sm:$0xff]
    %v55 = vld [vmem:[%s4 + $0x88] sm:$0xff]
    %v56 = vld [vmem:[%s4 + $0x90] sm:$0xff]
    %v57 = vld [vmem:[%s4 + $0x98] sm:$0xff]
    %v58 = vld [vmem:[%s4 + $0xa0] sm:$0xff]
    %v59 = vld [vmem:[%s4 + $0xa8] sm:$0xff]
    %v60 = vld [vmem:[%s4 + $0xb0] sm:$0xff]
    %v61 = vld [vmem:[%s4 + $0xb8] sm:$0xff]
    %v62 = vld [vmem:[%s4 + $0xc0] sm:$0xff]
    %v63 = vld [vmem:[%s4 + $0xc8] sm:$0xff]
    %v64 = vld [vmem:[%s4 + $0xd0] sm:$0xff]
    %v65 = vld [vmem:[%s4 + $0xd8] sm:$0xff]
    %v66 = vld [vmem:[%s4 + $0xe0] sm:$0xff]
    %v67 = vld [vmem:[%s4 + $0xe8] sm:$0xff]
    %v68 = vld [vmem:[%s4 + $0xf0] sm:$0xff]
    %v69 = vld [vmem:[%s4 + $0xf8] sm:$0xff]
    %70 = vmatprep.subr.mxu0 0.0
    %71 = vmatpush1.msra.mxu0 %v53
    %72 = vmatprep.subr.mxu0 0.0
    %73 = vmatpush1.msra.mxu0 %v52
    %74 = vmatprep.subr.mxu0 0.0
    %75 = vmatpush1.msra.mxu0 %v51
    %76 = vmatprep.subr.mxu0 0.0
    %77 = vmatpush1.msra.mxu0 %v50
    %78 = vmatprep.subr.mxu0 0.0
    %79 = vmatpush1.msra.mxu0 %v49
    %80 = vmatprep.subr.mxu0 0.0
    %81 = vmatpush1.msra.mxu0 %v48
    %82 = vmatprep.subr.mxu0 0.0
    %83 = vmatpush1.msra.mxu0 %v47
    %84 = vmatprep.subr.mxu0 0.0
    %85 = vmatpush1.msra.mxu0 %v46
    %86 = vmatprep.subr.mxu0 0.0
    %87 = vmatpush1.msra.mxu0 %v45
    %88 = vmatprep.subr.mxu0 0.0
    %89 = vmatpush1.msra.mxu0 %v44
    %90 = vmatprep.subr.mxu0 0.0
    %91 = vmatpush1.msra.mxu0 %v43
    %92 = vmatprep.subr.mxu0 0.0
    %93 = vmatpush1.msra.mxu0 %v42
    %94 = vmatprep.subr.mxu0 0.0
    %95 = vmatpush1.msra.mxu0 %v41
    %96 = vmatprep.subr.mxu0 0.0
    %97 = vmatpush1.msra.mxu0 %v40
    %98 = vmatprep.subr.mxu0 0.0
    %99 = vmatpush1.msra.mxu0 %v39
    %100 = vmatprep.subr.mxu0 0.0
    %101 = vmatpush1.msra.mxu0 %v38
    %102 = vmatprep.subr.mxu0 0.0
    %103 = vmatpush2.msra.mxu0 %v69
    %104 = vmatprep.subr.mxu0 0.0
    %105 = vmatpush2.msra.mxu0 %v68
    %106 = vmatprep.subr.mxu0 0.0
    %107 = vmatpush2.msra.mxu0 %v67
    %108 = vmatprep.subr.mxu0 0.0
    %109 = vmatpush2.msra.mxu0 %v66
    %110 = vmatprep.subr.mxu0 0.0
    %111 = vmatpush2.msra.mxu0 %v65
    %112 = vmatprep.subr.mxu0 0.0
    %113 = vmatpush2.msra.mxu0 %v64
    %114 = vmatprep.subr.mxu0 0.0
    %115 = vmatpush2.msra.mxu0 %v63
    %116 = vmatprep.subr.mxu0 0.0
    %117 = vmatpush2.msra.mxu0 %v62
    %118 = vmatprep.subr.mxu0 0.0
    %119 = vmatpush2.msra.mxu0 %v61
    %120 = vmatprep.subr.mxu0 0.0
    %121 = vmatpush2.msra.mxu0 %v60
    %122 = vmatprep.subr.mxu0 0.0
    %123 = vmatpush2.msra.mxu0 %v59
    %124 = vmatprep.subr.mxu0 0.0
    %125 = vmatpush2.msra.mxu0 %v58
    %126 = vmatprep.subr.mxu0 0.0
    %127 = vmatpush2.msra.mxu0 %v57
    %128 = vmatprep.subr.mxu0 0.0
    %129 = vmatpush2.msra.mxu0 %v56
    %130 = vmatprep.subr.mxu0 0.0
    %131 = vmatpush2.msra.mxu0 %v55
    %132 = vmatprep.subr.mxu0 0.0
    %133 = vmatpush2.msra.mxu0 %v54
    %134 = vmatprep.mubr.f32.mxu0 %v37
    %135 = vmatmul.mubr.f32.gmra.mxu0 %v36
    %v136 = vpop.f32.mrf.mxu0
    %v137 = vadd.f32 0.0, %v136
    %v138 = vpop.f32.mrf.mxu0
    %139 = vdwg.mxu0
    %v140 = vld [vmem:[%s2] sm:$0xff]
    %v141 = vld [vmem:[%s3] sm:$0xff]
    %v142 = vld [vmem:[%s3 + $0x8] sm:$0xff]
    %v143 = vld [vmem:[%s3 + $0x10] sm:$0xff]
    %v144 = vld [vmem:[%s3 + $0x18] sm:$0xff]
    %v145 = vld [vmem:[%s1] sm:$0xff]
    %147 = vset.pattern.permute.xlu0 0
    %148 = vperm.xlu0 %147, %v145
    %v149 = vpop.permute.xlu0 %148
    %v151 = vmul.f32 %v137, %v149
    %vm152 = vcmask 261120
    %v154 = vsel %vm152, %v140, 0
    %156 = vmatprep.subr.mxu0 0.0
    %157 = vmatpush1.msra.mxu0 0.0
    %158 = vmatprep.subr.mxu0 0.0
    %159 = vmatpush1.msra.mxu0 0.0
    %160 = vmatprep.subr.mxu0 0.0
    %161 = vmatpush1.msra.mxu0 0.0
    %162 = vmatprep.subr.mxu0 0.0
    %163 = vmatpush1.msra.mxu0 0.0
    %164 = vmatprep.subr.mxu0 0.0
    %165 = vmatpush1.msra.mxu0 0.0
    %166 = vmatprep.subr.mxu0 0.0
    %167 = vmatpush1.msra.mxu0 0.0
    %168 = vmatprep.subr.mxu0 0.0
    %169 = vmatpush1.msra.mxu0 0.0
    %170 = vmatprep.subr.mxu0 0.0
    %171 = vmatpush1.msra.mxu0 0.0
    %172 = vmatprep.subr.mxu0 0.0
    %173 = vmatpush1.msra.mxu0 0.0
    %174 = vmatprep.subr.mxu0 0.0
    %175 = vmatpush1.msra.mxu0 0.0
    %176 = vmatprep.subr.mxu0 0.0
    %177 = vmatpush1.msra.mxu0 0.0
    %178 = vmatprep.subr.mxu0 0.0
    %179 = vmatpush1.msra.mxu0 0.0
    %180 = vmatprep.subr.mxu0 0.0
    %181 = vmatpush1.msra.mxu0 %v144
    %182 = vmatprep.subr.mxu0 0.0
    %183 = vmatpush1.msra.mxu0 %v143
    %184 = vmatprep.subr.mxu0 0.0
    %185 = vmatpush1.msra.mxu0 %v142
    %186 = vmatprep.subr.mxu0 0.0
    %187 = vmatpush1.msra.mxu0 %v141
    %188 = vmatprep.subr.mxu0 0.0
    %189 = vmatpush2.msra.mxu0 0.0
    %190 = vmatprep.subr.mxu0 0.0
    %191 = vmatpush2.msra.mxu0 0.0
    %192 = vmatprep.subr.mxu0 0.0
    %193 = vmatpush2.msra.mxu0 0.0
    %194 = vmatprep.subr.mxu0 0.0
    %195 = vmatpush2.msra.mxu0 0.0
    %196 = vmatprep.subr.mxu0 0.0
    %197 = vmatpush2.msra.mxu0 0.0
    %198 = vmatprep.subr.mxu0 0.0
    %199 = vmatpush2.msra.mxu0 0.0
    %200 = vmatprep.subr.mxu0 0.0
    %201 = vmatpush2.msra.mxu0 0.0
    %202 = vmatprep.subr.mxu0 0.0
    %203 = vmatpush2.msra.mxu0 0.0
    %204 = vmatprep.subr.mxu0 0.0
    %205 = vmatpush2.msra.mxu0 0.0
    %206 = vmatprep.subr.mxu0 0.0
    %207 = vmatpush2.msra.mxu0 0.0
    %208 = vmatprep.subr.mxu0 0.0
    %209 = vmatpush2.msra.mxu0 0.0
    %210 = vmatprep.subr.mxu0 0.0
    %211 = vmatpush2.msra.mxu0 0.0
    %212 = vmatprep.subr.mxu0 0.0
    %213 = vmatpush2.msra.mxu0 0.0
    %214 = vmatprep.subr.mxu0 0.0
    %215 = vmatpush2.msra.mxu0 0.0
    %216 = vmatprep.subr.mxu0 0.0
    %217 = vmatpush2.msra.mxu0 0.0
    %218 = vmatprep.subr.mxu0 0.0
    %219 = vmatpush2.msra.mxu0 0.0
    %220 = vmatprep.mubr.f32.mxu0 0.0
    %221 = vmatmul.mubr.f32.gmra.mxu0 %v154
    %v222 = vpop.f32.mrf.mxu0
    %v223 = vadd.f32 %v151, %v222
    %v224 = vpop.f32.mrf.mxu0
    %225 = vdwg.mxu0
    %v226 = vld [vmem:[%s5] sm:$0x1]
    %v228 = vlaneseq
    %v229 = vshrl.u32 %v228, 7
    %v230 = vsub.s32 0, %v229
    %v231 = vrot.slane %v226, %v230
    %v233 = vadd.f32 %v223, %v231
    %v234 = vmax.f32 %v233, 0.0
    %v235 = vld [vmem:[%s6] sm:$0xff]
    %v236 = vld [vmem:[%s6 + $0x8] sm:$0xff]
    %v237 = vld [vmem:[%s6 + $0x10] sm:$0xff]
    %v238 = vld [vmem:[%s6 + $0x18] sm:$0xff]
    %v239 = vld [vmem:[%s7] sm:$0x1]
    %v241 = vlaneseq
    %v242 = vshrl.u32 %v241, 7
    %v243 = vsub.s32 0, %v242
    %v244 = vrot.slane %v239, %v243
    %v247 = vsel %vm152, %v234, 0
    %249 = vmatprep.subr.mxu0 0.0
    %250 = vmatpush1.msra.mxu0 0.0
    %251 = vmatprep.subr.mxu0 0.0
    %252 = vmatpush1.msra.mxu0 0.0
    %253 = vmatprep.subr.mxu0 0.0
    %254 = vmatpush1.msra.mxu0 0.0
    %255 = vmatprep.subr.mxu0 0.0
    %256 = vmatpush1.msra.mxu0 0.0
    %257 = vmatprep.subr.mxu0 0.0
    %258 = vmatpush1.msra.mxu0 0.0
    %259 = vmatprep.subr.mxu0 0.0
    %260 = vmatpush1.msra.mxu0 0.0
    %261 = vmatprep.subr.mxu0 0.0
    %262 = vmatpush1.msra.mxu0 0.0
    %263 = vmatprep.subr.mxu0 0.0
    %264 = vmatpush1.msra.mxu0 0.0
    %265 = vmatprep.subr.mxu0 0.0
    %266 = vmatpush1.msra.mxu0 0.0
    %267 = vmatprep.subr.mxu0 0.0
    %268 = vmatpush1.msra.mxu0 0.0
    %269 = vmatprep.subr.mxu0 0.0
    %270 = vmatpush1.msra.mxu0 0.0
    %271 = vmatprep.subr.mxu0 0.0
    %272 = vmatpush1.msra.mxu0 0.0
    %273 = vmatprep.subr.mxu0 0.0
    %274 = vmatpush1.msra.mxu0 %v238
    %275 = vmatprep.subr.mxu0 0.0
    %276 = vmatpush1.msra.mxu0 %v237
    %277 = vmatprep.subr.mxu0 0.0
    %278 = vmatpush1.msra.mxu0 %v236
    %279 = vmatprep.subr.mxu0 0.0
    %280 = vmatpush1.msra.mxu0 %v235
    %281 = vmatprep.subr.mxu0 0.0
    %282 = vmatpush2.msra.mxu0 0.0
    %283 = vmatprep.subr.mxu0 0.0
    %284 = vmatpush2.msra.mxu0 0.0
    %285 = vmatprep.subr.mxu0 0.0
    %286 = vmatpush2.msra.mxu0 0.0
    %287 = vmatprep.subr.mxu0 0.0
    %288 = vmatpush2.msra.mxu0 0.0
    %289 = vmatprep.subr.mxu0 0.0
    %290 = vmatpush2.msra.mxu0 0.0
    %291 = vmatprep.subr.mxu0 0.0
    %292 = vmatpush2.msra.mxu0 0.0
    %293 = vmatprep.subr.mxu0 0.0
    %294 = vmatpush2.msra.mxu0 0.0
    %295 = vmatprep.subr.mxu0 0.0
    %296 = vmatpush2.msra.mxu0 0.0
    %297 = vmatprep.subr.mxu0 0.0
    %298 = vmatpush2.msra.mxu0 0.0
    %299 = vmatprep.subr.mxu0 0.0
    %300 = vmatpush2.msra.mxu0 0.0
    %301 = vmatprep.subr.mxu0 0.0
    %302 = vmatpush2.msra.mxu0 0.0
    %303 = vmatprep.subr.mxu0 0.0
    %304 = vmatpush2.msra.mxu0 0.0
    %305 = vmatprep.subr.mxu0 0.0
    %306 = vmatpush2.msra.mxu0 0.0
    %307 = vmatprep.subr.mxu0 0.0
    %308 = vmatpush2.msra.mxu0 0.0
    %309 = vmatprep.subr.mxu0 0.0
    %310 = vmatpush2.msra.mxu0 0.0
    %311 = vmatprep.subr.mxu0 0.0
    %312 = vmatpush2.msra.mxu0 0.0
    %313 = vmatprep.mubr.f32.mxu0 0.0
    %314 = vmatmul.mubr.f32.gmra.mxu0 %v247
    %v315 = vpop.f32.mrf.mxu0
    %v316 = vadd.f32 %v244, %v315
    %v317 = vpop.f32.mrf.mxu0
    %318 = vdwg.mxu0
    %v319 = vmax.f32 %v316, 0.0
    %v320 = vld [vmem:[%s8] sm:$0xff]
    %v321 = vld [vmem:[%s8 + $0x8] sm:$0xff]
    %v322 = vld [vmem:[%s8 + $0x10] sm:$0xff]
    %v323 = vld [vmem:[%s8 + $0x18] sm:$0xff]
    %v324 = vld [vmem:[%s9] sm:$0x1]
    %v326 = vlaneseq
    %v327 = vshrl.u32 %v326, 7
    %v328 = vsub.s32 0, %v327
    %v329 = vrot.slane %v324, %v328
    %v332 = vsel %vm152, %v319, 0
    %334 = vmatprep.subr.mxu0 0.0
    %335 = vmatpush1.msra.mxu0 0.0
    %336 = vmatprep.subr.mxu0 0.0
    %337 = vmatpush1.msra.mxu0 0.0
    %338 = vmatprep.subr.mxu0 0.0
    %339 = vmatpush1.msra.mxu0 0.0
    %340 = vmatprep.subr.mxu0 0.0
    %341 = vmatpush1.msra.mxu0 0.0
    %342 = vmatprep.subr.mxu0 0.0
    %343 = vmatpush1.msra.mxu0 0.0
    %344 = vmatprep.subr.mxu0 0.0
    %345 = vmatpush1.msra.mxu0 0.0
    %346 = vmatprep.subr.mxu0 0.0
    %347 = vmatpush1.msra.mxu0 0.0
    %348 = vmatprep.subr.mxu0 0.0
    %349 = vmatpush1.msra.mxu0 0.0
    %350 = vmatprep.subr.mxu0 0.0
    %351 = vmatpush1.msra.mxu0 0.0
    %352 = vmatprep.subr.mxu0 0.0
    %353 = vmatpush1.msra.mxu0 0.0
    %354 = vmatprep.subr.mxu0 0.0
    %355 = vmatpush1.msra.mxu0 0.0
    %356 = vmatprep.subr.mxu0 0.0
    %357 = vmatpush1.msra.mxu0 0.0
    %358 = vmatprep.subr.mxu0 0.0
    %359 = vmatpush1.msra.mxu0 %v323
    %360 = vmatprep.subr.mxu0 0.0
    %361 = vmatpush1.msra.mxu0 %v322
    %362 = vmatprep.subr.mxu0 0.0
    %363 = vmatpush1.msra.mxu0 %v321
    %364 = vmatprep.subr.mxu0 0.0
    %365 = vmatpush1.msra.mxu0 %v320
    %366 = vmatprep.subr.mxu0 0.0
    %367 = vmatpush2.msra.mxu0 0.0
    %368 = vmatprep.subr.mxu0 0.0
    %369 = vmatpush2.msra.mxu0 0.0
    %370 = vmatprep.subr.mxu0 0.0
    %371 = vmatpush2.msra.mxu0 0.0
    %372 = vmatprep.subr.mxu0 0.0
    %373 = vmatpush2.msra.mxu0 0.0
    %374 = vmatprep.subr.mxu0 0.0
    %375 = vmatpush2.msra.mxu0 0.0
    %376 = vmatprep.subr.mxu0 0.0
    %377 = vmatpush2.msra.mxu0 0.0
    %378 = vmatprep.subr.mxu0 0.0
    %379 = vmatpush2.msra.mxu0 0.0
    %380 = vmatprep.subr.mxu0 0.0
    %381 = vmatpush2.msra.mxu0 0.0
    %382 = vmatprep.subr.mxu0 0.0
    %383 = vmatpush2.msra.mxu0 0.0
    %384 = vmatprep.subr.mxu0 0.0
    %385 = vmatpush2.msra.mxu0 0.0
    %386 = vmatprep.subr.mxu0 0.0
    %387 = vmatpush2.msra.mxu0 0.0
    %388 = vmatprep.subr.mxu0 0.0
    %389 = vmatpush2.msra.mxu0 0.0
    %390 = vmatprep.subr.mxu0 0.0
    %391 = vmatpush2.msra.mxu0 0.0
    %392 = vmatprep.subr.mxu0 0.0
    %393 = vmatpush2.msra.mxu0 0.0
    %394 = vmatprep.subr.mxu0 0.0
    %395 = vmatpush2.msra.mxu0 0.0
    %396 = vmatprep.subr.mxu0 0.0
    %397 = vmatpush2.msra.mxu0 0.0
    %398 = vmatprep.mubr.f32.mxu0 0.0
    %399 = vmatmul.mubr.f32.gmra.mxu0 %v332
    %v400 = vpop.f32.mrf.mxu0
    %v401 = vadd.f32 %v329, %v400
    %v402 = vpop.f32.mrf.mxu0
    %403 = vdwg.mxu0
    %404 = vst [vmem:[#allocation2] sm:$0xff] %v401
    // Predicated region
    $region42: #{tpu_custom_call.1} parent=1 // pred_check
      _
    $region43: #{tpu_custom_call.1} parent=1 // pred_check_branch
      %406 = sbr.rel (0) target = $region45
    $region44: #{tpu_custom_call.1} parent=1 // pred_region
      %s408 = ssub.s32 128, 128
      %409 = vsyncadd [#allocation3], %s408
      %s411 = sshll.u32 [#allocation2], 4
      %s412 = int_to_ptr.vmem [resolvable:$true] %s411
      %414 = dma.vmem_to_hbm [thread:$0]  %s412, 128, %s10, [#allocation3]
    $region45: #{tpu_custom_call.1} parent=1 // pred_fallthru
      _
    // Predicated region
    $region46: #{tpu_custom_call.1} parent=1 // pred_check
      _
    $region47: #{tpu_custom_call.1} parent=1 // pred_check_branch
      %416 = sbr.rel (0) target = $region49
    $region48: #{tpu_custom_call.1} parent=1 // pred_region
      %417 = dma.done [#allocation3], 128
    $region49: #{tpu_custom_call.1} parent=1 // pred_fallthru
      _
    %418 = vsyncpa [#allocation3], 1

</llo_original>
